<compile_context>
chip_gen: v5e
topology: v5e:2x2
jax: 0.10.0
libtpu: 0.0.40
codegen_flags: <defaults>
</compile_context>

<pallas_src>
import functools

import jax
import jax.numpy as jnp
from jax import lax
from jax.experimental import pallas as pl
from jax.experimental.pallas import tpu as pltpu


def _node_grid_blocks():
    """2 parallel frontier blocks on v7x (2 TensorCores), 1 block on v5e/v6e."""
    try:
        kind = jax.devices()[0].device_kind.lower()
    except Exception:
        return 1
    return 2 if ("v7" in kind or "tpu7" in kind) else 1


# ---------------------------------------------------------------------------
# Kernel 1: Encoder.forward linear projection  (+ hoisted attention projection)
#   ctx      = last_hidden_state @ W_enc^T + b_enc           (Encoder.forward)
#   e_proj^T = W_attn @ ctx^T + b_attn[:,None]               (node-invariant, stored
#                                                              transposed for kernel 2)
# Tiled over token rows so DMA of the next row block overlaps the matmul.
# ---------------------------------------------------------------------------
def encoder_prepare_kernel(hs_ref, wenc_t_ref, benc_ref, wattn_ref, battn_col_ref,
                           ctx_ref, eprojT_ref):
    ctx = (jnp.dot(hs_ref[...], wenc_t_ref[...], preferred_element_type=jnp.float32)
           + benc_ref[...])                                            # (blk, H)
    ctx_ref[...] = ctx
    # e_proj^T = W_attn @ ctx^T + b_attn[:,None]  (contract both minor dims once,
    # per example, so the per-node kernel needs no transpose at all)
    eprojT_ref[...] = (lax.dot_general(wattn_ref[...], ctx, (((1,), (1,)), ((), ())),
                                       preferred_element_type=jnp.float32)
                       + battn_col_ref[...])                           # (H, blk)


def run_encoder_prepare(last_hidden, wenc_t, benc2, wattn, battn_col, row_blk=256):
    S, D = last_hidden.shape
    H = wenc_t.shape[1]
    blk = min(row_blk, ((S + 7) // 8) * 8)
    Sp = ((S + blk - 1) // blk) * blk
    if Sp != S:
        last_hidden = jnp.pad(last_hidden, ((0, Sp - S), (0, 0)))
    full = lambda shape: pl.BlockSpec(shape, lambda i: (0, 0))
    ctx, eproj_t = pl.pallas_call(
        encoder_prepare_kernel,
        out_shape=(jax.ShapeDtypeStruct((Sp, H), jnp.float32),
                   jax.ShapeDtypeStruct((H, Sp), jnp.float32)),
        grid=(Sp // blk,),
        in_specs=[pl.BlockSpec((blk, D), lambda i: (i, 0)),
                  full(wenc_t.shape), full(benc2.shape),
                  full(wattn.shape), full(battn_col.shape)],
        out_specs=(pl.BlockSpec((blk, H), lambda i: (i, 0)),
                   pl.BlockSpec((H, blk), lambda i: (0, i))),
        compiler_params=pltpu.CompilerParams(dimension_semantics=("parallel",)),
    )(last_hidden, wenc_t, benc2, wattn, battn_col)
    return ctx[:S], eproj_t[:, :S]


# ---------------------------------------------------------------------------
# Kernel 2: fused Luong attention + ALL score heads, batched over the frontier
#   e = h @ e_proj^T ; w = softmax(e) ; c = w @ ctx
#   logits = [h | c] @ W_all^T + b_all     (single K=256 contraction, Vpad=128 lanes)
#   per-head log_softmax over its own lane segment (single exp pass)
# ---------------------------------------------------------------------------
def attn_score_kernel(h_ref, eprojT_ref, ctx_ref, wscore_t_ref, bscore_ref,
                      ctxout_ref, logp_ref, *, head_sizes):
    h = h_ref[...]                                                     # (blk, H)

    # attention: e_proj already transposed -> plain dot, no in-loop relayout
    e = jnp.dot(h, eprojT_ref[...], preferred_element_type=jnp.float32)  # (blk, S)
    e = e - jnp.max(e, axis=1, keepdims=True)
    p = jnp.exp(e)
    w = p * pl.reciprocal(jnp.sum(p, axis=1, keepdims=True), approx=True)
    c = jnp.dot(w, ctx_ref[...], preferred_element_type=jnp.float32)     # (blk, H)
    ctxout_ref[...] = c

    # all heads in one K=256 matmul (lane-concat is pure vreg placement)
    hc = jnp.concatenate([h, c], axis=1)                                 # (blk, 2H)
    logits = (jnp.dot(hc, wscore_t_ref[...], preferred_element_type=jnp.float32)
              + bscore_ref[...])                                         # (blk, Vpad)

    # single-pass multi-head log_softmax: one exp over the block, masked max/sum.
    lane = lax.broadcasted_iota(jnp.int32, logits.shape, 1)
    neg = jnp.float32(-1e30)
    masks = []
    head_max = jnp.zeros_like(logits)
    off = 0
    for v in head_sizes:                       # static unroll over 3 heads
        m = (lane >= off) & (lane < off + v)
        masks.append(m)
        row_max = jnp.max(jnp.where(m, logits, neg), axis=1, keepdims=True)
        head_max = jnp.where(m, row_max, head_max)
        off += v
    shifted = logits - head_max
    pexp = jnp.exp(shifted)                    # one EUP pass over all 128 lanes
    logp = jnp.zeros_like(logits)
    for m in masks:
        s = jnp.sum(jnp.where(m, pexp, 0.0), axis=1, keepdims=True)
        logp = jnp.where(m, shifted - jnp.log(s), logp)
    logp_ref[...] = logp


def run_attn_score_fused(h_nodes, ctx, eproj_t, wscore_t, b_score, head_sizes,
                         num_blocks=None):
    """h_nodes:(Bn,H) ctx:(S,H) eproj_t:(H,S) wscore_t:(2H,Vpad) b_score:(1,Vpad)."""
    Bn, H = h_nodes.shape
    Vpad = b_score.shape[1]
    if num_blocks is None:
        num_blocks = _node_grid_blocks()
    blk = max(8, ((-(-Bn // num_blocks) + 7) // 8) * 8)   # sublane-aligned fat blocks
    Bp = blk * num_blocks
    if Bp != Bn:
        h_nodes = jnp.pad(h_nodes, ((0, Bp - Bn), (0, 0)))

    kernel = functools.partial(attn_score_kernel, head_sizes=head_sizes)
    full = lambda shape: pl.BlockSpec(shape, lambda i: (0, 0))
    # Invariant inputs (eproj_t, ctx, weights) use constant index maps; at 1-2 grid
    # steps their (re-)DMA cost is negligible — verified tiny in the Mosaic dump.
    contexts, logp = pl.pallas_call(
        kernel,
        out_shape=(jax.ShapeDtypeStruct((Bp, H), jnp.float32),
                   jax.ShapeDtypeStruct((Bp, Vpad), jnp.float32)),
        grid=(num_blocks,),
        in_specs=[pl.BlockSpec((blk, H), lambda i: (i, 0)),
                  full(eproj_t.shape), full(ctx.shape),
                  full(wscore_t.shape), full(b_score.shape)],
        out_specs=(pl.BlockSpec((blk, H), lambda i: (i, 0)),
                   pl.BlockSpec((blk, Vpad), lambda i: (i, 0))),
        compiler_params=pltpu.CompilerParams(dimension_semantics=("parallel",)),
    )(h_nodes, eproj_t, ctx, wscore_t, b_score)
    return contexts[:Bn], logp[:Bn]


# ---------------------------------------------------------------------------
# Kernel 3: ConstructorTypeModule.update, batched over ALL frontier nodes
#   per node b, per field f:
#     x      = [field_emb[f] | ctx[b]] @ Ww^T + b_w
#     gates  = x @ Wih^T + b_ih + h0[b] @ Whh^T + b_hh
#            = g_field[f] + g_node[b]        (linearity -> no redundant matmuls)
#   Grid over fields (padded to an 8-bucket); the node-invariant-over-fields term
#   g_node (Bn,4H) is computed once into VMEM scratch at grid step 0.
# ---------------------------------------------------------------------------
def constructor_update_kernel(femb_ref, ctx_ref, h0_ref, c0_ref,
                              ww_f_t_ref, ww_c_t_ref, bw_ref,
                              wih_t_ref, bih_ref, whh_t_ref, bhh_ref,
                              h1_ref, c1_ref, gn_ref):
    H = h0_ref.shape[1]

    @pl.when(pl.program_id(0) == 0)
    def _():
        x_n = (jnp.dot(ctx_ref[...], ww_c_t_ref[...], preferred_element_type=jnp.float32)
               + bw_ref[...])                                                  # (Bn, H)
        gn_ref[...] = (
            jnp.dot(x_n, wih_t_ref[...], preferred_element_type=jnp.float32)
            + bih_ref[...]
            + jnp.dot(h0_ref[...], whh_t_ref[...], preferred_element_type=jnp.float32)
            + bhh_ref[...])                                                    # (Bn, 4H)

    # this grid step's field row (1, F): two tiny matmuls, done exactly once per field
    x_f = jnp.dot(femb_ref[...], ww_f_t_ref[...], preferred_element_type=jnp.float32)  # (1, H)
    g_f = jnp.dot(x_f, wih_t_ref[...], preferred_element_type=jnp.float32)             # (1, 4H)

    gates = gn_ref[...] + g_f                  # (Bn, 4H), sublane broadcast of one row
    # PyTorch gate order i, f, g, o — slices 128-lane aligned since H == 128
    i_g = jax.nn.sigmoid(gates[:, 0:H])
    f_g = jax.nn.sigmoid(gates[:, H:2 * H])
    g_g = jnp.tanh(gates[:, 2 * H:3 * H])
    o_g = jax.nn.sigmoid(gates[:, 3 * H:4 * H])
    c1 = f_g * c0_ref[...] + i_g * g_g                                         # (Bn, H)
    h1_ref[...] = o_g * jnp.tanh(c1)
    c1_ref[...] = c1


def run_constructor_update(femb, ctx_nodes, h0_nodes, c0_nodes, ctor_params):
    """Returns (h1, c1) of shape (Bn, Nf, H): one LSTM child state per node per field.
    TODO(synk): in the real decode, nodes sharing a constructor type are bucketed
    before calling this (different constructors have different field_emb tables)."""
    ww_f_t, ww_c_t, bw2, wih_t, bih2, whh_t, bhh2 = ctor_params
    Nf, F = femb.shape
    Bn, H = h0_nodes.shape
    Bnp = ((Bn + 7) // 8) * 8
    Nfp = ((Nf + 7) // 8) * 8                  # fixed field bucket -> no Nf recompiles
    if Bnp != Bn:
        ctx_nodes = jnp.pad(ctx_nodes, ((0, Bnp - Bn), (0, 0)))
        h0_nodes = jnp.pad(h0_nodes, ((0, Bnp - Bn), (0, 0)))
        c0_nodes = jnp.pad(c0_nodes, ((0, Bnp - Bn), (0, 0)))
    femb3 = jnp.pad(femb, ((0, Nfp - Nf), (0, 0))).reshape(Nfp, 1, F)

    full = lambda shape: pl.BlockSpec(shape, lambda f: (0, 0))
    h1, c1 = pl.pallas_call(
        constructor_update_kernel,
        out_shape=(jax.ShapeDtypeStruct((Nfp, Bnp, H), jnp.float32),
                   jax.ShapeDtypeStruct((Nfp, Bnp, H), jnp.float32)),
        grid=(Nfp,),
        in_specs=[pl.BlockSpec((None, 1, F), lambda f: (f, 0, 0)),
                  full((Bnp, H)), full((Bnp, H)), full((Bnp, H)),
                  full(ww_f_t.shape), full(ww_c_t.shape), full(bw2.shape),
                  full(wih_t.shape), full(bih2.shape), full(whh_t.shape), full(bhh2.shape)],
        out_specs=(pl.BlockSpec((None, Bnp, H), lambda f: (f, 0, 0)),
                   pl.BlockSpec((None, Bnp, H), lambda f: (f, 0, 0))),
        scratch_shapes=[pltpu.VMEM((Bnp, 4 * H), jnp.float32)],
        compiler_params=pltpu.CompilerParams(dimension_semantics=("arbitrary",)),
    )(femb3, ctx_nodes, h0_nodes, c0_nodes,
      ww_f_t, ww_c_t, bw2, wih_t, bih2, whh_t, bhh2)
    h1 = jnp.swapaxes(h1, 0, 1)[:Bn, :Nf]
    c1 = jnp.swapaxes(c1, 0, 1)[:Bn, :Nf]
    return h1, c1


# ---------------------------------------------------------------------------
# One-time weight preparation (no per-node-call transposes/slices)
# ---------------------------------------------------------------------------
def prepare_encoder_weights(w_enc, b_enc, w_attn, b_attn):
    return (w_enc.T, b_enc.reshape(1, -1), w_attn, b_attn.reshape(-1, 1))


def prepare_score_weights(heads, H):
    """heads: list of (w:(V_i,2H), b:(V_i,)). One combined (2H, Vpad) weight."""
    sizes = tuple(int(w.shape[0]) for w, _ in heads)
    v_tot = sum(sizes)
    v_pad = max(128, ((v_tot + 127) // 128) * 128)
    w_all = jnp.concatenate([w for w, _ in heads], axis=0)
    b_all = jnp.concatenate([b for _, b in heads], axis=0)
    w_all = jnp.pad(w_all, ((0, v_pad - v_tot), (0, 0)))
    b_all = jnp.pad(b_all, (0, v_pad - v_tot))
    return w_all.T, b_all.reshape(1, v_pad), sizes


def prepare_constructor_weights(w_w, b_w, w_ih, b_ih, w_hh, b_hh, H):
    F = w_w.shape[1] - H
    return (w_w[:, :F].T, w_w[:, F:].T, b_w.reshape(1, H),
            w_ih.T, b_ih.reshape(1, 4 * H), w_hh.T, b_hh.reshape(1, 4 * H))


# ---------------------------------------------------------------------------
# Pure-JAX references (mirror the PyTorch math)
# ---------------------------------------------------------------------------
def ref_attn_score(h, ctx, w_attn, b_attn, w_score, b_score):
    e_proj = ctx @ w_attn.T + b_attn
    e = h @ e_proj.T
    w = jax.nn.softmax(e, axis=1)
    c = w @ ctx
    logits = jnp.concatenate([h, c], axis=1) @ w_score.T + b_score
    return c, jax.nn.log_softmax(logits, axis=1)


def ref_constructor_update_batched(femb, ctxs, h0s, c0s, w_w, b_w, w_ih, b_ih, w_hh, b_hh):
    Bn = ctxs.shape[0]
    Nf = femb.shape[0]
    H = h0s.shape[1]
    femb_b = jnp.broadcast_to(femb[None, :, :], (Bn, Nf, femb.shape[1]))
    ctx_b = jnp.broadcast_to(ctxs[:, None, :], (Bn, Nf, H))
    x = jnp.concatenate([femb_b, ctx_b], axis=-1) @ w_w.T + b_w
    gates = x @ w_ih.T + b_ih + (h0s @ w_hh.T + b_hh)[:, None, :]
    i_g, f_g, g_g, o_g = jnp.split(gates, 4, axis=-1)
    i_g, f_g, o_g = jax.nn.sigmoid(i_g), jax.nn.sigmoid(f_g), jax.nn.sigmoid(o_g)
    g_g = jnp.tanh(g_g)
    c1 = f_g * c0s[:, None, :] + i_g * g_g
    return o_g * jnp.tanh(c1), c1


if __name__ == "__main__":
    H = 128        # Encoder embedding_dim == decoder enc_hid/field_emb size (lane-dense)
    D_BERT = 256   # stand-in BERT hidden size
    S = 8          # tokens of one encoded sentence
    B_NODES = 128  # frontier nodes per launch: 1 fat block (v5e/v6e) or 2x64 (v7x)
    NF = 4         # n_field of one constructor (padded to an 8-field bucket)
    N_REDUCE, N_COMP, N_PRIM = 2, 8, 16

    key = jax.random.PRNGKey(0)
    ks = jax.random.split(key, 24)
    norm = lambda k, shape: (0.1 * jax.random.normal(k, shape)).astype(jnp.float32)

    # TODO(synk): the pretrained HuggingFace BERT (AutoModel) has no Pallas equivalent;
    # `last_hidden` stands in for self.model(**input).last_hidden_state (1 example).
    last_hidden = norm(ks[0], (S, D_BERT))
    w_enc, b_enc = norm(ks[1], (H, D_BERT)), norm(ks[2], (H,))

    # LuongAttention params
    w_attn, b_attn = norm(ks[3], (H, H)), norm(ks[4], (H,))

    # Reduce / CompositeType / PrimitiveType score heads
    w_reduce, b_reduce = norm(ks[5], (N_REDUCE, 2 * H)), norm(ks[6], (N_REDUCE,))
    w_comp, b_comp = norm(ks[7], (N_COMP, 2 * H)), norm(ks[8], (N_COMP,))
    w_prim, b_prim = norm(ks[9], (N_PRIM, 2 * H)), norm(ks[10], (N_PRIM,))

    # ConstructorTypeModule + shared v_lstm params
    field_emb = norm(ks[11], (NF, H))
    w_w, b_w = norm(ks[12], (H, 2 * H)), norm(ks[13], (H,))
    w_ih, b_ih = norm(ks[14], (4 * H, H)), norm(ks[15], (4 * H,))
    w_hh, b_hh = norm(ks[16], (4 * H, H)), norm(ks[17], (4 * H,))

    # ---- one-time weight prep ----------------------------------------------
    enc_p = prepare_encoder_weights(w_enc, b_enc, w_attn, b_attn)
    wscore_t, b_score2, head_sizes = prepare_score_weights(
        [(w_reduce, b_reduce), (w_comp, b_comp), (w_prim, b_prim)], H)
    ctor_p = prepare_constructor_weights(w_w, b_w, w_ih, b_ih, w_hh, b_hh, H)

    # ---- Pallas: Encoder.forward projection + hoisted (transposed) attn proj --
    ctx, eproj_t = run_encoder_prepare(last_hidden, *enc_p)

    # frontier of decoder node states (init_state = encoder_outputs[-1] per node)
    h_nodes = jnp.broadcast_to(ctx[-1:, :], (B_NODES, H)) + norm(ks[18], (B_NODES, H))
    c_nodes = h_nodes

    # ---- Pallas: fused attention + all 3 score heads, batched over nodes ----
    contexts, logp = run_attn_score_fused(h_nodes, ctx, eproj_t,
                                          wscore_t, b_score2, head_sizes)
    o1, o2 = N_REDUCE, N_REDUCE + N_COMP
    logp_reduce = logp[:, 0:o1]
    logp_comp = logp[:, o1:o2]
    logp_prim = logp[:, o2:o2 + N_PRIM]

    # ---- Pallas: constructor update batched over the whole frontier ----------
    h1, c1 = run_constructor_update(field_emb, contexts, h_nodes, c_nodes, ctor_p)
    jax.block_until_ready((ctx, eproj_t, contexts, logp, h1, c1))

    # ---- correctness vs pure-JAX references ---------------------------------
    ctx_ref = last_hidden @ w_enc.T + b_enc
    eproj_ref = ctx_ref @ w_attn.T + b_attn
    c_ref, lp_r_ref = ref_attn_score(h_nodes, ctx_ref, w_attn, b_attn, w_reduce, b_reduce)
    _, lp_c_ref = ref_attn_score(h_nodes, ctx_ref, w_attn, b_attn, w_comp, b_comp)
    _, lp_p_ref = ref_attn_score(h_nodes, ctx_ref, w_attn, b_attn, w_prim, b_prim)
    h1_ref, c1_ref = ref_constructor_update_batched(field_emb, c_ref, h_nodes, c_nodes,
                                                    w_w, b_w, w_ih, b_ih, w_hh, b_hh)

    tol = dict(atol=2e-3, rtol=2e-3)   # loosened for pl.reciprocal(approx=True)
    assert jnp.allclose(ctx, ctx_ref, **tol), "encoder projection mismatch"
    assert jnp.allclose(eproj_t, eproj_ref.T, **tol), "attention projection mismatch"
    assert jnp.allclose(contexts, c_ref, **tol), "attention context mismatch"
    assert jnp.allclose(logp_reduce, lp_r_ref, **tol), "reduce score mismatch"
    assert jnp.allclose(logp_comp, lp_c_ref, **tol), "composite score mismatch"
    assert jnp.allclose(logp_prim, lp_p_ref, **tol), "primitive score mismatch"
    assert jnp.allclose(h1, h1_ref, **tol), "constructor hidden mismatch"
    assert jnp.allclose(c1, c1_ref, **tol), "constructor cell mismatch"

    # TODO(synk): the recursive grammar-driven tree expansion / beam search is
    # host-side data-dependent recursion; it repeatedly calls the two batched node
    # kernels above on accumulated frontiers and is not a single Pallas kernel.
    print("KERNEL_OK")
</pallas_src>

<mosaic_0001>
module attributes {stable_mosaic.version = 11 : i64} {
  func.func @encoder_prepare_kernel(%arg0: i32, %arg1: memref<8x256xf32, #tpu.memory_space<vmem>>, %arg2: memref<256x128xf32, #tpu.memory_space<vmem>>, %arg3: memref<1x128xf32, #tpu.memory_space<vmem>>, %arg4: memref<128x128xf32, #tpu.memory_space<vmem>>, %arg5: memref<128x1xf32, #tpu.memory_space<vmem>>, %arg6: memref<8x128xf32, #tpu.memory_space<vmem>>, %arg7: memref<128x8xf32, #tpu.memory_space<vmem>>) attributes {dimension_semantics = [#tpu.dimension_semantics<parallel>], iteration_bounds = array<i64: 1>, scalar_prefetch = 0 : i64, scratch_operands = 0 : i64, tpu.core_type = #tpu.core_type<tc>, window_params = [{transform_indices = @transform_0, window_bounds = array<i64: 8, 256>}, {pipeline_mode = #tpu.pipeline_mode<synchronous>, transform_indices = @transform_1, window_bounds = array<i64: 256, 128>}, {pipeline_mode = #tpu.pipeline_mode<synchronous>, transform_indices = @transform_2, window_bounds = array<i64: 1, 128>}, {pipeline_mode = #tpu.pipeline_mode<synchronous>, transform_indices = @transform_3, window_bounds = array<i64: 128, 128>}, {pipeline_mode = #tpu.pipeline_mode<synchronous>, transform_indices = @transform_4, window_bounds = array<i64: 128, 1>}, {transform_indices = @transform_5, window_bounds = array<i64: 8, 128>}, {transform_indices = @transform_6, window_bounds = array<i64: 128, 8>}]} {
    %c0 = arith.constant 0 : index
    %c0_0 = arith.constant 0 : index
    %0 = vector.load %arg1[%c0, %c0_0] : memref<8x256xf32, #tpu.memory_space<vmem>>, vector<8x256xf32>
    %c0_1 = arith.constant 0 : index
    %c0_2 = arith.constant 0 : index
    %1 = vector.load %arg2[%c0_1, %c0_2] : memref<256x128xf32, #tpu.memory_space<vmem>>, vector<256x128xf32>
    %cst = arith.constant dense<0.000000e+00> : vector<8x128xf32>
    %2 = tpu.matmul %0, %1, %cst {dimension_numbers = #tpu.dot_dimension_numbers<[1], [0], [0], [1], [0, 0, 1, 1], [], []>} : vector<8x256xf32>, vector<256x128xf32>, vector<8x128xf32> -> vector<8x128xf32>
    %c0_3 = arith.constant 0 : index
    %c0_4 = arith.constant 0 : index
    %3 = vector.load %arg3[%c0_3, %c0_4] : memref<1x128xf32, #tpu.memory_space<vmem>>, vector<1x128xf32>
    %4 = vector.broadcast %3 : vector<1x128xf32> to vector<8x128xf32>
    %5 = arith.addf %2, %4 : vector<8x128xf32>
    %c0_5 = arith.constant 0 : index
    %c0_6 = arith.constant 0 : index
    %6 = vector.load %arg6[%c0_5, %c0_6] : memref<8x128xf32, #tpu.memory_space<vmem>>, vector<8x128xf32>
    tpu.vector_store %arg6[%c0_5, %c0_6], %5 {strides = array<i32>} : memref<8x128xf32, #tpu.memory_space<vmem>>, vector<8x128xf32>,
    %c0_7 = arith.constant 0 : index
    %c0_8 = arith.constant 0 : index
    %7 = vector.load %arg4[%c0_7, %c0_8] : memref<128x128xf32, #tpu.memory_space<vmem>>, vector<128x128xf32>
    %cst_9 = arith.constant dense<0.000000e+00> : vector<128x8xf32>
    %8 = tpu.matmul %7, %5, %cst_9 {dimension_numbers = #tpu.dot_dimension_numbers<[1], [1], [0], [0], [0, 0, 1, 0], [], []>} : vector<128x128xf32>, vector<8x128xf32>, vector<128x8xf32> -> vector<128x8xf32>
    %c0_10 = arith.constant 0 : index
    %c0_11 = arith.constant 0 : index
    %9 = vector.load %arg5[%c0_10, %c0_11] : memref<128x1xf32, #tpu.memory_space<vmem>>, vector<128x1xf32>
    %10 = vector.broadcast %9 : vector<128x1xf32> to vector<128x8xf32>
    %11 = arith.addf %8, %10 : vector<128x8xf32>
    %c0_12 = arith.constant 0 : index
    %c0_13 = arith.constant 0 : index
    %12 = vector.load %arg7[%c0_12, %c0_13] : memref<128x8xf32, #tpu.memory_space<vmem>>, vector<128x8xf32>
    tpu.vector_store %arg7[%c0_12, %c0_13], %11 {strides = array<i32>} : memref<128x8xf32, #tpu.memory_space<vmem>>, vector<128x8xf32>,
    return
  }
  func.func @transform_0(%arg0: i32) -> (i32, i32) {
    %c0_i32 = arith.constant 0 : i32
    %c0_i32_0 = arith.constant 0 : i32
    return %arg0, %c0_i32 : i32, i32
  }
  func.func @transform_1(%arg0: i32) -> (i32, i32) {
    %c0_i32 = arith.constant 0 : i32
    %c0_i32_0 = arith.constant 0 : i32
    %c0_i32_1 = arith.constant 0 : i32
    return %c0_i32, %c0_i32_0 : i32, i32
  }
  func.func @transform_2(%arg0: i32) -> (i32, i32) {
    %c0_i32 = arith.constant 0 : i32
    %c0_i32_0 = arith.constant 0 : i32
    %c0_i32_1 = arith.constant 0 : i32
    return %c0_i32, %c0_i32_0 : i32, i32
  }
  func.func @transform_3(%arg0: i32) -> (i32, i32) {
    %c0_i32 = arith.constant 0 : i32
    %c0_i32_0 = arith.constant 0 : i32
    %c0_i32_1 = arith.constant 0 : i32
    return %c0_i32, %c0_i32_0 : i32, i32
  }
  func.func @transform_4(%arg0: i32) -> (i32, i32) {
    %c0_i32 = arith.constant 0 : i32
    %c0_i32_0 = arith.constant 0 : i32
    %c0_i32_1 = arith.constant 0 : i32
    return %c0_i32, %c0_i32_0 : i32, i32
  }
  func.func @transform_5(%arg0: i32) -> (i32, i32) {
    %c0_i32 = arith.constant 0 : i32
    %c0_i32_0 = arith.constant 0 : i32
    return %arg0, %c0_i32 : i32, i32
  }
  func.func @transform_6(%arg0: i32) -> (i32, i32) {
    %c0_i32 = arith.constant 0 : i32
    %c0_i32_0 = arith.constant 0 : i32
    return %c0_i32, %arg0 : i32, i32
  }
}

</mosaic_0001>

<llo_original>
// kernel: tpu_custom_call.1
$region0: #{tpu_custom_call.1}
  #allocation0 [shape = 'u32[]', space=smem, size = 0x4, offset = 0x4, fixed_abs, tag = 'smem constant byte address 0x4 - core index']
  #allocation1 [shape = 'u32[72,128]{1,0:T(1,128)}', space=vmem, size = 0x9000, scoped, tag = 'internal scratch']
  %s0 = inlined_call_operand.hbm [shape: f32[8,256], index: 0, kind: input, shape index: {}]
  %s1 = inlined_call_operand.hbm [shape: f32[256,128], index: 1, kind: input, shape index: {}]
  %s2 = inlined_call_operand.vmem [shape: f32[1,128], index: 2, kind: input, shape index: {}]
  %s3 = inlined_call_operand.vmem [shape: f32[128,128], index: 3, kind: input, shape index: {}]
  %s4 = inlined_call_operand.vmem [shape: f32[128,1], index: 4, kind: input, shape index: {}]
  %s5 = inlined_call_operand.hbm [shape: f32[8,128], index: 5, kind: output, shape index: {0}]
  %s6 = inlined_call_operand.vmem [shape: f32[128,8], index: 6, kind: output, shape index: {1}]
  %7 = xla_tuple %s5, %s6
  %s8 = sld [smem:[#allocation0]]
  $region46: #{tpu_custom_call.1} parent=0
    _
  %s10 = ssub.s32 1, %s8
  %s11 = scalar_select 0, %s10, %s8
  $region1: #{tpu_custom_call.1} parent=0
    #allocation2 [shape = 'u8[8192]{0}', space=vmem, size = 0x2000, scoped, tag = 'input window, operand 0, single buffered']
    #allocation3 [shape = 's32[1]{0}', space=sflag, size = 0x4, scoped, tag = 'scoped memory for tpu_custom_call.1']
    #allocation4 [shape = 's32[1]{0}', space=sflag, size = 0x4, scoped, tag = 'scoped memory for tpu_custom_call.1']
    #allocation5 [shape = 'u8[131072]{0}', space=vmem, size = 0x20000, scoped, tag = 'input window, operand 1, single buffered']
    #allocation6 [shape = 's32[1]{0}', space=sflag, size = 0x4, scoped, tag = 'scoped memory for tpu_custom_call.1']
    #allocation7 [shape = 'u8[4096]{0}', space=vmem, size = 0x1000, scoped, tag = 'output window, operand 0, single buffered']
    %12 = vsyncpa [#allocation3], 0
    %13 = vsyncpa [#allocation6], 0
    %14 = vsyncpa [#allocation4], 0
    // Predicated region
    $region2: #{tpu_custom_call.1} parent=1 // pred_check
      _
    $region3: #{tpu_custom_call.1} parent=1 // pred_check_branch
      %16 = sbr.rel (0) target = $region5
    $region4: #{tpu_custom_call.1} parent=1 // pred_region
      %18 = vsyncadd [#allocation3], 0
      %s20 = sshll.u32 %s0, 4
      %s21 = int_to_ptr.hbm [resolvable:$true] %s20
      %s22 = sshll.u32 [#allocation2], 4
      %s23 = int_to_ptr.vmem [resolvable:$true] %s22
      %25 = dma.hbm_to_vmem [thread:$0]  %s21, 256, %s23, [#allocation3]
    $region5: #{tpu_custom_call.1} parent=1 // pred_fallthru
      _
    // Predicated region
    $region6: #{tpu_custom_call.1} parent=1 // pred_check
      _
    $region7: #{tpu_custom_call.1} parent=1 // pred_check_branch
      %27 = sbr.rel (0) target = $region9
    $region8: #{tpu_custom_call.1} parent=1 // pred_region
      %29 = vsyncadd [#allocation6], 0
      %s30 = sshll.u32 %s1, 4
      %s31 = int_to_ptr.hbm [resolvable:$true] %s30
      %s32 = sshll.u32 [#allocation5], 4
      %s33 = int_to_ptr.vmem [resolvable:$true] %s32
      %38 = dma.hbm_to_vmem [thread:$0]  %s31, 4096, %s33, [#allocation6], 128, 128, 8
    $region9: #{tpu_custom_call.1} parent=1 // pred_fallthru
      _
    // Predicated region
    $region10: #{tpu_custom_call.1} parent=1 // pred_check
      _
    $region11: #{tpu_custom_call.1} parent=1 // pred_check_branch
      %40 = sbr.rel (0) target = $region13
    $region12: #{tpu_custom_call.1} parent=1 // pred_region
      _
    $region13: #{tpu_custom_call.1} parent=1 // pred_fallthru
      _
    // Predicated region
    $region14: #{tpu_custom_call.1} parent=1 // pred_check
      _
    $region15: #{tpu_custom_call.1} parent=1 // pred_check_branch
      %42 = sbr.rel (0) target = $region17
    $region16: #{tpu_custom_call.1} parent=1 // pred_region
      _
    $region17: #{tpu_custom_call.1} parent=1 // pred_fallthru
      _
    // Predicated region
    $region18: #{tpu_custom_call.1} parent=1 // pred_check
      _
    $region19: #{tpu_custom_call.1} parent=1 // pred_check_branch
      %44 = sbr.rel (0) target = $region21
    $region20: #{tpu_custom_call.1} parent=1 // pred_region
      _
    $region21: #{tpu_custom_call.1} parent=1 // pred_fallthru
      _
    // Predicated region
    $region22: #{tpu_custom_call.1} parent=1 // pred_check
      _
    $region23: #{tpu_custom_call.1} parent=1 // pred_check_branch
      %46 = sbr.rel (0) target = $region25
    $region24: #{tpu_custom_call.1} parent=1 // pred_region
      %48 = dma.done [#allocation3], 256
    $region25: #{tpu_custom_call.1} parent=1 // pred_fallthru
      _
    // Predicated region
    $region26: #{tpu_custom_call.1} parent=1 // pred_check
      _
    $region27: #{tpu_custom_call.1} parent=1 // pred_check_branch
      %50 = sbr.rel (0) target = $region29
    $region28: #{tpu_custom_call.1} parent=1 // pred_region
      %52 = dma.done [#allocation6], 4096
    $region29: #{tpu_custom_call.1} parent=1 // pred_fallthru
      _
    %v53 = vld [vmem:[#allocation2] sm:$0xff]
    %v54 = vld [vmem:[#allocation2 + $0x8] sm:$0xff]
    %v55 = vld [vmem:[#allocation5] sm:$0xff]
    %v56 = vld [vmem:[#allocation5 + $0x8] sm:$0xff]
    %v57 = vld [vmem:[#allocation5 + $0x10] sm:$0xff]
    %v58 = vld [vmem:[#allocation5 + $0x18] sm:$0xff]
    %v59 = vld [vmem:[#allocation5 + $0x20] sm:$0xff]
    %v60 = vld [vmem:[#allocation5 + $0x28] sm:$0xff]
    %v61 = vld [vmem:[#allocation5 + $0x30] sm:$0xff]
    %v62 = vld [vmem:[#allocation5 + $0x38] sm:$0xff]
    %v63 = vld [vmem:[#allocation5 + $0x40] sm:$0xff]
    %v64 = vld [vmem:[#allocation5 + $0x48] sm:$0xff]
    %v65 = vld [vmem:[#allocation5 + $0x50] sm:$0xff]
    %v66 = vld [vmem:[#allocation5 + $0x58] sm:$0xff]
    %v67 = vld [vmem:[#allocation5 + $0x60] sm:$0xff]
    %v68 = vld [vmem:[#allocation5 + $0x68] sm:$0xff]
    %v69 = vld [vmem:[#allocation5 + $0x70] sm:$0xff]
    %v70 = vld [vmem:[#allocation5 + $0x78] sm:$0xff]
    %v71 = vld [vmem:[#allocation5 + $0x80] sm:$0xff]
    %v72 = vld [vmem:[#allocation5 + $0x88] sm:$0xff]
    %v73 = vld [vmem:[#allocation5 + $0x90] sm:$0xff]
    %v74 = vld [vmem:[#allocation5 + $0x98] sm:$0xff]
    %v75 = vld [vmem:[#allocation5 + $0xa0] sm:$0xff]
    %v76 = vld [vmem:[#allocation5 + $0xa8] sm:$0xff]
    %v77 = vld [vmem:[#allocation5 + $0xb0] sm:$0xff]
    %v78 = vld [vmem:[#allocation5 + $0xb8] sm:$0xff]
    %v79 = vld [vmem:[#allocation5 + $0xc0] sm:$0xff]
    %v80 = vld [vmem:[#allocation5 + $0xc8] sm:$0xff]
    %v81 = vld [vmem:[#allocation5 + $0xd0] sm:$0xff]
    %v82 = vld [vmem:[#allocation5 + $0xd8] sm:$0xff]
    %v83 = vld [vmem:[#allocation5 + $0xe0] sm:$0xff]
    %v84 = vld [vmem:[#allocation5 + $0xe8] sm:$0xff]
    %v85 = vld [vmem:[#allocation5 + $0xf0] sm:$0xff]
    %v86 = vld [vmem:[#allocation5 + $0xf8] sm:$0xff]
    %v87 = vld [vmem:[%s2] sm:$0x1]
    %v89 = vperm.slane %v87, 0
    %91 = vmatpush.msra.mxu0 %v70
    %92 = vmatpush.msra.mxu0 %v69
    %93 = vmatpush.msra.mxu0 %v68
    %94 = vmatpush.msra.mxu0 %v67
    %95 = vmatpush.msra.mxu0 %v66
    %96 = vmatpush.msra.mxu0 %v65
    %97 = vmatpush.msra.mxu0 %v64
    %98 = vmatpush.msra.mxu0 %v63
    %99 = vmatpush.msra.mxu0 %v62
    %100 = vmatpush.msra.mxu0 %v61
    %101 = vmatpush.msra.mxu0 %v60
    %102 = vmatpush.msra.mxu0 %v59
    %103 = vmatpush.msra.mxu0 %v58
    %104 = vmatpush.msra.mxu0 %v57
    %105 = vmatpush.msra.mxu0 %v56
    %106 = vmatpush.msra.mxu0 %v55
    %107 = vmatmul.f32.gmra.mxu0 %v53
    %v108 = vpop.f32.mrf.mxu0
    %v109 = vadd.f32 %v89, %v108
    %110 = vdwg.mxu0
    %111 = vmatpush.msra.mxu0 %v86
    %112 = vmatpush.msra.mxu0 %v85
    %113 = vmatpush.msra.mxu0 %v84
    %114 = vmatpush.msra.mxu0 %v83
    %115 = vmatpush.msra.mxu0 %v82
    %116 = vmatpush.msra.mxu0 %v81
    %117 = vmatpush.msra.mxu0 %v80
    %118 = vmatpush.msra.mxu0 %v79
    %119 = vmatpush.msra.mxu0 %v78
    %120 = vmatpush.msra.mxu0 %v77
    %121 = vmatpush.msra.mxu0 %v76
    %122 = vmatpush.msra.mxu0 %v75
    %123 = vmatpush.msra.mxu0 %v74
    %124 = vmatpush.msra.mxu0 %v73
    %125 = vmatpush.msra.mxu0 %v72
    %126 = vmatpush.msra.mxu0 %v71
    %127 = vmatmul.f32.gmra.mxu0 %v54
    %v128 = vpop.f32.mrf.mxu0
    %v129 = vadd.f32 %v109, %v128
    %130 = vdwg.mxu0
    %131 = vst [vmem:[#allocation7] sm:$0xff] %v129
    %v132 = vld [vmem:[%s3] sm:$0xff]
    %v133 = vld [vmem:[%s3 + $0x8] sm:$0xff]
    %v134 = vld [vmem:[%s3 + $0x10] sm:$0xff]
    %v135 = vld [vmem:[%s3 + $0x18] sm:$0xff]
    %v136 = vld [vmem:[%s3 + $0x20] sm:$0xff]
    %v137 = vld [vmem:[%s3 + $0x28] sm:$0xff]
    %v138 = vld [vmem:[%s3 + $0x30] sm:$0xff]
    %v139 = vld [vmem:[%s3 + $0x38] sm:$0xff]
    %v140 = vld [vmem:[%s3 + $0x40] sm:$0xff]
    %v141 = vld [vmem:[%s3 + $0x48] sm:$0xff]
    %v142 = vld [vmem:[%s3 + $0x50] sm:$0xff]
    %v143 = vld [vmem:[%s3 + $0x58] sm:$0xff]
    %v144 = vld [vmem:[%s3 + $0x60] sm:$0xff]
    %v145 = vld [vmem:[%s3 + $0x68] sm:$0xff]
    %v146 = vld [vmem:[%s3 + $0x70] sm:$0xff]
    %v147 = vld [vmem:[%s3 + $0x78] sm:$0xff]
    %v148 = vld [vmem:[%s4] sm:$0xff]
    %v149 = vld [vmem:[%s4 + $0x8] sm:$0xff]
    %v150 = vld [vmem:[%s4 + $0x10] sm:$0xff]
    %v151 = vld [vmem:[%s4 + $0x18] sm:$0xff]
    %v152 = vld [vmem:[%s4 + $0x20] sm:$0xff]
    %v153 = vld [vmem:[%s4 + $0x28] sm:$0xff]
    %v154 = vld [vmem:[%s4 + $0x30] sm:$0xff]
    %v155 = vld [vmem:[%s4 + $0x38] sm:$0xff]
    %v156 = vld [vmem:[%s4 + $0x40] sm:$0xff]
    %v157 = vld [vmem:[%s4 + $0x48] sm:$0xff]
    %v158 = vld [vmem:[%s4 + $0x50] sm:$0xff]
    %v159 = vld [vmem:[%s4 + $0x58] sm:$0xff]
    %v160 = vld [vmem:[%s4 + $0x60] sm:$0xff]
    %v161 = vld [vmem:[%s4 + $0x68] sm:$0xff]
    %v162 = vld [vmem:[%s4 + $0x70] sm:$0xff]
    %v163 = vld [vmem:[%s4 + $0x78] sm:$0xff]
    %165 = vset.pattern.permute.xlu0 0
    %166 = vperm.xlu0 %165, %v148
    %v167 = vpop.permute.xlu0 %166
    %170 = vset.pattern.permute.xlu0 0
    %171 = vperm.xlu0 %170, %v149
    %v172 = vpop.permute.xlu0 %171
    %175 = vset.pattern.permute.xlu0 0
    %176 = vperm.xlu0 %175, %v150
    %v177 = vpop.permute.xlu0 %176
    %180 = vset.pattern.permute.xlu0 0
    %181 = vperm.xlu0 %180, %v151
    %v182 = vpop.permute.xlu0 %181
    %185 = vset.pattern.permute.xlu0 0
    %186 = vperm.xlu0 %185, %v152
    %v187 = vpop.permute.xlu0 %186
    %190 = vset.pattern.permute.xlu0 0
    %191 = vperm.xlu0 %190, %v153
    %v192 = vpop.permute.xlu0 %191
    %195 = vset.pattern.permute.xlu0 0
    %196 = vperm.xlu0 %195, %v154
    %v197 = vpop.permute.xlu0 %196
    %200 = vset.pattern.permute.xlu0 0
    %201 = vperm.xlu0 %200, %v155
    %v202 = vpop.permute.xlu0 %201
    %205 = vset.pattern.permute.xlu0 0
    %206 = vperm.xlu0 %205, %v156
    %v207 = vpop.permute.xlu0 %206
    %210 = vset.pattern.permute.xlu0 0
    %211 = vperm.xlu0 %210, %v157
    %v212 = vpop.permute.xlu0 %211
    %215 = vset.pattern.permute.xlu0 0
    %216 = vperm.xlu0 %215, %v158
    %v217 = vpop.permute.xlu0 %216
    %220 = vset.pattern.permute.xlu0 0
    %221 = vperm.xlu0 %220, %v159
    %v222 = vpop.permute.xlu0 %221
    %225 = vset.pattern.permute.xlu0 0
    %226 = vperm.xlu0 %225, %v160
    %v227 = vpop.permute.xlu0 %226
    %230 = vset.pattern.permute.xlu0 0
    %231 = vperm.xlu0 %230, %v161
    %v232 = vpop.permute.xlu0 %231
    %235 = vset.pattern.permute.xlu0 0
    %236 = vperm.xlu0 %235, %v162
    %v237 = vpop.permute.xlu0 %236
    %240 = vset.pattern.permute.xlu0 0
    %241 = vperm.xlu0 %240, %v163
    %v242 = vpop.permute.xlu0 %241
    %244 = vmatpush.xpose.msra.mxu0 0.0
    %245 = vmatpush.xpose.msra.mxu0 0.0
    %246 = vmatpush.xpose.msra.mxu0 0.0
    %247 = vmatpush.xpose.msra.mxu0 0.0
    %248 = vmatpush.xpose.msra.mxu0 0.0
    %249 = vmatpush.xpose.msra.mxu0 0.0
    %250 = vmatpush.xpose.msra.mxu0 0.0
    %251 = vmatpush.xpose.msra.mxu0 0.0
    %252 = vmatpush.xpose.msra.mxu0 0.0
    %253 = vmatpush.xpose.msra.mxu0 0.0
    %254 = vmatpush.xpose.msra.mxu0 0.0
    %255 = vmatpush.xpose.msra.mxu0 0.0
    %256 = vmatpush.xpose.msra.mxu0 0.0
    %257 = vmatpush.xpose.msra.mxu0 0.0
    %258 = vmatpush.xpose.msra.mxu0 0.0
    %259 = vmatpush.xpose.msra.mxu0 %v129
    %260 = vmatmul.f32.gmra.mxu0 %v132
    %v261 = vpop.f32.mrf.mxu0
    %v262 = vadd.f32 %v167, %v261
    %263 = vmatmul.f32.gmra.mxu0 %v133
    %v264 = vpop.f32.mrf.mxu0
    %v265 = vadd.f32 %v172, %v264
    %266 = vmatmul.f32.gmra.mxu0 %v134
    %v267 = vpop.f32.mrf.mxu0
    %v268 = vadd.f32 %v177, %v267
    %269 = vmatmul.f32.gmra.mxu0 %v135
    %v270 = vpop.f32.mrf.mxu0
    %v271 = vadd.f32 %v182, %v270
    %272 = vmatmul.f32.gmra.mxu0 %v136
    %v273 = vpop.f32.mrf.mxu0
    %v274 = vadd.f32 %v187, %v273
    %275 = vmatmul.f32.gmra.mxu0 %v137
    %v276 = vpop.f32.mrf.mxu0
    %v277 = vadd.f32 %v192, %v276
    %278 = vmatmul.f32.gmra.mxu0 %v138
    %v279 = vpop.f32.mrf.mxu0
    %v280 = vadd.f32 %v197, %v279
    %281 = vmatmul.f32.gmra.mxu0 %v139
    %v282 = vpop.f32.mrf.mxu0
    %v283 = vadd.f32 %v202, %v282
    %284 = vmatmul.f32.gmra.mxu0 %v140
    %v285 = vpop.f32.mrf.mxu0
    %v286 = vadd.f32 %v207, %v285
    %287 = vmatmul.f32.gmra.mxu0 %v141
    %v288 = vpop.f32.mrf.mxu0
    %v289 = vadd.f32 %v212, %v288
    %290 = vmatmul.f32.gmra.mxu0 %v142
    %v291 = vpop.f32.mrf.mxu0
    %v292 = vadd.f32 %v217, %v291
    %293 = vmatmul.f32.gmra.mxu0 %v143
    %v294 = vpop.f32.mrf.mxu0
    %v295 = vadd.f32 %v222, %v294
    %296 = vmatmul.f32.gmra.mxu0 %v144
    %v297 = vpop.f32.mrf.mxu0
    %v298 = vadd.f32 %v227, %v297
    %299 = vmatmul.f32.gmra.mxu0 %v145
    %v300 = vpop.f32.mrf.mxu0
    %v301 = vadd.f32 %v232, %v300
    %302 = vmatmul.f32.gmra.mxu0 %v146
    %v303 = vpop.f32.mrf.mxu0
    %v304 = vadd.f32 %v237, %v303
    %305 = vmatmul.f32.gmra.mxu0 %v147
    %v306 = vpop.f32.mrf.mxu0
    %v307 = vadd.f32 %v242, %v306
    %308 = vdwg.mxu0
    %vm309 = vcmask 64512
    %310 = vst.msk [vmem:[%s6] sm:$0xff] %vm309, %v262
    %311 = vst.msk [vmem:[%s6 + $0x8] sm:$0xff] %vm309, %v265
    %312 = vst.msk [vmem:[%s6 + $0x10] sm:$0xff] %vm309, %v268
    %313 = vst.msk [vmem:[%s6 + $0x18] sm:$0xff] %vm309, %v271
    %314 = vst.msk [vmem:[%s6 + $0x20] sm:$0xff] %vm309, %v274
    %315 = vst.msk [vmem:[%s6 + $0x28] sm:$0xff] %vm309, %v277
    %316 = vst.msk [vmem:[%s6 + $0x30] sm:$0xff] %vm309, %v280
    %317 = vst.msk [vmem:[%s6 + $0x38] sm:$0xff] %vm309, %v283
    %318 = vst.msk [vmem:[%s6 + $0x40] sm:$0xff] %vm309, %v286
    %319 = vst.msk [vmem:[%s6 + $0x48] sm:$0xff] %vm309, %v289
    %320 = vst.msk [vmem:[%s6 + $0x50] sm:$0xff] %vm309, %v292
    %321 = vst.msk [vmem:[%s6 + $0x58] sm:$0xff] %vm309, %v295
    %322 = vst.msk [vmem:[%s6 + $0x60] sm:$0xff] %vm309, %v298
    %323 = vst.msk [vmem:[%s6 + $0x68] sm:$0xff] %vm309, %v301
    %324 = vst.msk [vmem:[%s6 + $0x70] sm:$0xff] %vm309, %v304
    %325 = vst.msk [vmem:[%s6 + $0x78] sm:$0xff] %vm309, %v307
    // Predicated region
    $region30: #{tpu_custom_call.1} parent=1 // pred_check
      _
    $region31: #{tpu_custom_call.1} parent=1 // pred_check_branch
      %327 = sbr.rel (0) target = $region33
    $region32: #{tpu_custom_call.1} parent=1 // pred_region
      %329 = vsyncadd [#allocation4], 0
      %s331 = sshll.u32 [#allocation7], 4
      %s332 = int_to_ptr.vmem [resolvable:$true] %s331
      %s333 = sshll.u32 %s5, 4
      %s334 = int_to_ptr.hbm [resolvable:$true] %s333
      %336 = dma.vmem_to_hbm [thread:$0]  %s332, 128, %s334, [#allocation4]
    $region33: #{tpu_custom_call.1} parent=1 // pred_fallthru
      _
    // Predicated region
    $region34: #{tpu_custom_call.1} parent=1 // pred_check
      _
    $region35: #{tpu_custom_call.1} parent=1 // pred_check_branch
      %338 = sbr.rel (0) target = $region37
    $region36: #{tpu_custom_call.1} parent=1 // pred_region
      _
    $region37: #{tpu_custom_call.1} parent=1 // pred_fallthru
      _
    // Predicated region
    $region38: #{tpu_custom_call.1} parent=1 // pred_check
      _
    $region39: #{tpu_custom_call.1} parent=1 // pred_check_branch
      %340 = sbr.rel (0) target = $region41
    $region40: #{tpu_custom_call.1} parent=1 // pred_region
      %342 = dma.done [#allocation4], 128
    $region41: #{tpu_custom_call.1} parent=1 // pred_fallthru
      _
    // Predicated region
    $region42: #{tpu_custom_call.1} parent=1 // pred_check
      _
    $region43: #{tpu_custom_call.1} parent=1 // pred_check_branch
      %344 = sbr.rel (0) target = $region45
    $region44: #{tpu_custom_call.1} parent=1 // pred_region
      _
    $region45: #{tpu_custom_call.1} parent=1 // pred_fallthru
      _
    %345 = vsyncpa [#allocation3], 1
    %346 = vsyncpa [#allocation6], 1
    %347 = vsyncpa [#allocation4], 1

</llo_original>
